<compile_context>
chip_gen: v5e
topology: v5e:2x2
jax: 0.10.0
libtpu: 0.0.40
codegen_flags: <defaults>
</compile_context>

<pallas_src>
import functools

import jax
import jax.numpy as jnp
from jax.experimental import pallas as pl
from jax.experimental.pallas import tpu as pltpu


def _round_up(a: int, m: int) -> int:
    return ((a + m - 1) // m) * m


def _policy_net_kernel(
    x_ref,
    w1_ref, b1_ref,
    w2_ref, b2_ref,
    wh_ref, bh_ref,   # fused head: [units, 2*out], [1, 2*out]
    out_ref,          # packed output tile: [tb, 2*out] = mean | std
    *,
    output_dim: int,
):
    mm_dtype = w1_ref.dtype  # bf16 (perf path) or f32 (exact path)

    # fc1 + ReLU  (dot operands in mm_dtype, accumulate + elementwise in f32)
    h1 = jnp.dot(x_ref[...].astype(mm_dtype), w1_ref[...],
                 preferred_element_type=jnp.float32)
    h1 = jnp.maximum(h1 + b1_ref[...], 0.0)

    # fc2 + ReLU
    h2 = jnp.dot(h1.astype(mm_dtype), w2_ref[...],
                 preferred_element_type=jnp.float32)
    h2 = jnp.maximum(h2 + b2_ref[...], 0.0)

    # fused heads: single matmul producing [mean | log_std]
    heads = jnp.dot(h2.astype(mm_dtype), wh_ref[...],
                    preferred_element_type=jnp.float32)
    heads = heads + bh_ref[...]

    # exp only the log_std lanes.  Mean lanes are zeroed before exp (exp(0)=1)
    # so no inf/NaN is ever produced, then the original mean values are
    # selected back.  exp runs on the EUP slot -> effectively free filler.
    col = jax.lax.broadcasted_iota(jnp.int32, heads.shape, dimension=1)
    is_std = col >= output_dim
    packed = jnp.where(is_std, jnp.exp(jnp.where(is_std, heads, 0.0)), heads)

    out_ref[...] = packed.astype(out_ref.dtype)


def prepare_params(params, *, matmul_dtype=jnp.bfloat16):
    """One-time param prep: fuse the two head layers and cast weights to the
    matmul dtype.  Biases stay f32 (bias/ReLU/exp are done in f32)."""
    wh = jnp.concatenate([params["wm"], params["ws"]], axis=1)   # [units, 2*out]
    bh = jnp.concatenate([params["bm"], params["bs"]], axis=1)   # [1, 2*out]
    return dict(
        w1=params["w1"].astype(matmul_dtype), b1=params["b1"].astype(jnp.float32),
        w2=params["w2"].astype(matmul_dtype), b2=params["b2"].astype(jnp.float32),
        wh=wh.astype(matmul_dtype),           bh=bh.astype(jnp.float32),
    )


def _lane_padded_bytes(rows: int, cols: int, dtype) -> int:
    # VMEM footprint of a [rows, cols] buffer after (8, 128) tiling.
    return _round_up(max(rows, 1), 8) * _round_up(max(cols, 1), 128) * jnp.dtype(dtype).itemsize


def policy_net_forward(x, prepared, *, block_b: int = 4096):
    """x: [B, input_dim] float32. prepared: output of prepare_params().

    Returns (mean, std), each [B, output_dim] float32.
    """
    B, input_dim = x.shape
    units = prepared["w1"].shape[1]
    out2 = prepared["wh"].shape[1]
    output_dim = out2 // 2

    # --- batch tiling ---------------------------------------------------
    # At least two tiles when possible (so the "parallel" axis shards across
    # both v7x TensorCores), tile rows a multiple of 8, capped at block_b.
    block_b = max(8, (block_b // 8) * 8)
    half = _round_up(pl.cdiv(B, 2), 8)
    tb = max(8, min(block_b, half))
    grid = (pl.cdiv(B, tb),)          # ragged last block: stores are masked

    # --- VMEM budget (lane-padded, double-buffered activations) ----------
    est = 2 * _lane_padded_bytes(tb, input_dim, x.dtype)        # x tiles
    est += 2 * _lane_padded_bytes(tb, out2, jnp.float32)        # out tiles
    est += 2 * _lane_padded_bytes(tb, units, jnp.float32)       # h1, h2
    est += _lane_padded_bytes(tb, out2, jnp.float32)            # heads
    for name in ("w1", "b1", "w2", "b2", "wh", "bh"):           # resident weights
        a = prepared[name]
        est += _lane_padded_bytes(a.shape[0], a.shape[1], a.dtype)
    vmem_limit = None
    if est > 32 * 1024 * 1024:
        vmem_limit = min(2 * est, 100 * 1024 * 1024)

    def resident(arr):
        # Full-array block, constant index_map: DMA'd once, stays in VMEM
        # across all batch tiles.
        return pl.BlockSpec(arr.shape, lambda i: (0, 0))

    packed = pl.pallas_call(
        functools.partial(_policy_net_kernel, output_dim=output_dim),
        out_shape=jax.ShapeDtypeStruct((B, out2), jnp.float32),
        grid=grid,
        in_specs=[
            pl.BlockSpec((tb, input_dim), lambda i: (i, 0)),
            resident(prepared["w1"]), resident(prepared["b1"]),
            resident(prepared["w2"]), resident(prepared["b2"]),
            resident(prepared["wh"]), resident(prepared["bh"]),
        ],
        out_specs=pl.BlockSpec((tb, out2), lambda i: (i, 0)),
        compiler_params=pltpu.CompilerParams(
            dimension_semantics=("parallel",),
            vmem_limit_bytes=vmem_limit,
        ),
    )(
        x,
        prepared["w1"], prepared["b1"],
        prepared["w2"], prepared["b2"],
        prepared["wh"], prepared["bh"],
    )

    mean = packed[:, :output_dim]
    std = packed[:, output_dim:]
    return mean, std


def init_params(key, input_dim, output_dim, units):
    """Deterministic synthetic init. Weights stored as [in, out] (transposed
    relative to PyTorch nn.Linear's [out, in]); biases as [1, out]."""
    ks = jax.random.split(key, 8)

    def linear(kw, kb, fan_in, fan_out):
        # Mimic nn.Linear's uniform(-1/sqrt(fan_in), 1/sqrt(fan_in)) init.
        bound = 1.0 / jnp.sqrt(jnp.float32(fan_in))
        w = jax.random.uniform(kw, (fan_in, fan_out), jnp.float32, -bound, bound)
        b = jax.random.uniform(kb, (1, fan_out), jnp.float32, -bound, bound)
        return w, b

    w1, b1 = linear(ks[0], ks[1], input_dim, units)
    w2, b2 = linear(ks[2], ks[3], units, units)
    wm, bm = linear(ks[4], ks[5], units, output_dim)
    ws, bs = linear(ks[6], ks[7], units, output_dim)
    return dict(w1=w1, b1=b1, w2=w2, b2=b2, wm=wm, bm=bm, ws=ws, bs=bs)


def _reference_forward(x, p):
    h1 = jnp.maximum(x @ p["w1"] + p["b1"], 0.0)
    h2 = jnp.maximum(h1 @ p["w2"] + p["b2"], 0.0)
    mean = h2 @ p["wm"] + p["bm"]
    std = jnp.exp(h2 @ p["ws"] + p["bs"])
    return mean, std


if __name__ == "__main__":
    key = jax.random.PRNGKey(0)
    k_x, k_p = jax.random.split(key)

    batch = 8
    input_dim = 16
    output_dim = 8
    units = 32

    x = jax.random.normal(k_x, (batch, input_dim), dtype=jnp.float32)
    params = init_params(k_p, input_dim, output_dim, units)
    mean_ref, std_ref = _reference_forward(x, params)

    # ---- exact-semantics path (f32 matmul operands) ----
    prep_f32 = prepare_params(params, matmul_dtype=jnp.float32)
    mean, std = policy_net_forward(x, prep_f32)
    jax.block_until_ready((mean, std))
    assert mean.shape == (batch, output_dim) and std.shape == (batch, output_dim)
    assert jnp.allclose(mean, mean_ref, atol=1e-5, rtol=1e-5)
    assert jnp.allclose(std, std_ref, atol=1e-5, rtol=1e-5)
    assert bool(jnp.all(std > 0.0))

    # ---- perf path (bf16 matmul operands, f32 accumulate/elementwise) ----
    prep_bf16 = prepare_params(params, matmul_dtype=jnp.bfloat16)
    mean_b, std_b = policy_net_forward(x, prep_bf16)
    jax.block_until_ready((mean_b, std_b))
    assert jnp.allclose(mean_b, mean_ref, atol=5e-2, rtol=5e-2)
    assert jnp.allclose(std_b, std_ref, atol=5e-2, rtol=5e-2)
    assert bool(jnp.all(std_b > 0.0))

    # ---- large, ragged, multi-tile path (3 grid steps, masked last block) ----
    big_b = 9000  # 3 tiles of tb=4096, last block has 808 valid rows
    xb = jax.random.normal(jax.random.PRNGKey(1), (big_b, input_dim), jnp.float32)
    mb, sb = policy_net_forward(xb, prep_f32, block_b=4096)
    jax.block_until_ready((mb, sb))
    mb_ref, sb_ref = _reference_forward(xb, params)
    assert mb.shape == (big_b, output_dim) and sb.shape == (big_b, output_dim)
    assert jnp.allclose(mb, mb_ref, atol=1e-5, rtol=1e-5)
    assert jnp.allclose(sb, sb_ref, atol=1e-5, rtol=1e-5)

    print("KERNEL_OK")
</pallas_src>

<mosaic_0001>
module attributes {stable_mosaic.version = 11 : i64} {
  func.func @_policy_net_kernel(%arg0: i32, %arg1: memref<8x16xf32, #tpu.memory_space<vmem>>, %arg2: memref<16x32xf32, #tpu.memory_space<vmem>>, %arg3: memref<1x32xf32, #tpu.memory_space<vmem>>, %arg4: memref<32x32xf32, #tpu.memory_space<vmem>>, %arg5: memref<1x32xf32, #tpu.memory_space<vmem>>, %arg6: memref<32x16xf32, #tpu.memory_space<vmem>>, %arg7: memref<1x16xf32, #tpu.memory_space<vmem>>, %arg8: memref<8x16xf32, #tpu.memory_space<vmem>>) attributes {dimension_semantics = [#tpu.dimension_semantics<parallel>], iteration_bounds = array<i64: 1>, scalar_prefetch = 0 : i64, scratch_operands = 0 : i64, tpu.core_type = #tpu.core_type<tc>, window_params = [{transform_indices = @transform_0, window_bounds = array<i64: 8, 16>}, {pipeline_mode = #tpu.pipeline_mode<synchronous>, transform_indices = @transform_1, window_bounds = array<i64: 16, 32>}, {pipeline_mode = #tpu.pipeline_mode<synchronous>, transform_indices = @transform_2, window_bounds = array<i64: 1, 32>}, {pipeline_mode = #tpu.pipeline_mode<synchronous>, transform_indices = @transform_3, window_bounds = array<i64: 32, 32>}, {pipeline_mode = #tpu.pipeline_mode<synchronous>, transform_indices = @transform_4, window_bounds = array<i64: 1, 32>}, {pipeline_mode = #tpu.pipeline_mode<synchronous>, transform_indices = @transform_5, window_bounds = array<i64: 32, 16>}, {pipeline_mode = #tpu.pipeline_mode<synchronous>, transform_indices = @transform_6, window_bounds = array<i64: 1, 16>}, {transform_indices = @transform_7, window_bounds = array<i64: 8, 16>}]} {
    %c0 = arith.constant 0 : index
    %c0_0 = arith.constant 0 : index
    %0 = vector.load %arg1[%c0, %c0_0] : memref<8x16xf32, #tpu.memory_space<vmem>>, vector<8x16xf32>
    %c0_1 = arith.constant 0 : index
    %c0_2 = arith.constant 0 : index
    %1 = vector.load %arg2[%c0_1, %c0_2] : memref<16x32xf32, #tpu.memory_space<vmem>>, vector<16x32xf32>
    %cst = arith.constant dense<0.000000e+00> : vector<8x32xf32>
    %2 = tpu.matmul %0, %1, %cst {dimension_numbers = #tpu.dot_dimension_numbers<[1], [0], [0], [1], [0, 0, 1, 1], [], []>} : vector<8x16xf32>, vector<16x32xf32>, vector<8x32xf32> -> vector<8x32xf32>
    %c0_3 = arith.constant 0 : index
    %c0_4 = arith.constant 0 : index
    %3 = vector.load %arg3[%c0_3, %c0_4] : memref<1x32xf32, #tpu.memory_space<vmem>>, vector<1x32xf32>
    %4 = vector.broadcast %3 : vector<1x32xf32> to vector<8x32xf32>
    %5 = arith.addf %2, %4 : vector<8x32xf32>
    %cst_5 = arith.constant 0.000000e+00 : f32
    %6 = vector.broadcast %cst_5 : f32 to vector<8x32xf32>
    %7 = arith.maximumf %5, %6 : vector<8x32xf32>
    %c0_6 = arith.constant 0 : index
    %c0_7 = arith.constant 0 : index
    %8 = vector.load %arg4[%c0_6, %c0_7] : memref<32x32xf32, #tpu.memory_space<vmem>>, vector<32x32xf32>
    %cst_8 = arith.constant dense<0.000000e+00> : vector<8x32xf32>
    %9 = tpu.matmul %7, %8, %cst_8 {dimension_numbers = #tpu.dot_dimension_numbers<[1], [0], [0], [1], [0, 0, 1, 1], [], []>} : vector<8x32xf32>, vector<32x32xf32>, vector<8x32xf32> -> vector<8x32xf32>
    %c0_9 = arith.constant 0 : index
    %c0_10 = arith.constant 0 : index
    %10 = vector.load %arg5[%c0_9, %c0_10] : memref<1x32xf32, #tpu.memory_space<vmem>>, vector<1x32xf32>
    %11 = vector.broadcast %10 : vector<1x32xf32> to vector<8x32xf32>
    %12 = arith.addf %9, %11 : vector<8x32xf32>
    %cst_11 = arith.constant 0.000000e+00 : f32
    %13 = vector.broadcast %cst_11 : f32 to vector<8x32xf32>
    %14 = arith.maximumf %12, %13 : vector<8x32xf32>
    %c0_12 = arith.constant 0 : index
    %c0_13 = arith.constant 0 : index
    %15 = vector.load %arg6[%c0_12, %c0_13] : memref<32x16xf32, #tpu.memory_space<vmem>>, vector<32x16xf32>
    %cst_14 = arith.constant dense<0.000000e+00> : vector<8x16xf32>
    %16 = tpu.matmul %14, %15, %cst_14 {dimension_numbers = #tpu.dot_dimension_numbers<[1], [0], [0], [1], [0, 0, 1, 1], [], []>} : vector<8x32xf32>, vector<32x16xf32>, vector<8x16xf32> -> vector<8x16xf32>
    %c0_15 = arith.constant 0 : index
    %c0_16 = arith.constant 0 : index
    %17 = vector.load %arg7[%c0_15, %c0_16] : memref<1x16xf32, #tpu.memory_space<vmem>>, vector<1x16xf32>
    %18 = vector.broadcast %17 : vector<1x16xf32> to vector<8x16xf32>
    %19 = arith.addf %16, %18 : vector<8x16xf32>
    %20 = tpu.iota {dimensions = array<i32: 1>} : vector<8x16xi32>
    %c8_i32 = arith.constant 8 : i32
    %21 = vector.broadcast %c8_i32 : i32 to vector<8x16xi32>
    %22 = arith.cmpi sge, %20, %21 : vector<8x16xi32>
    %cst_17 = arith.constant 0.000000e+00 : f32
    %23 = vector.broadcast %cst_17 : f32 to vector<8x16xf32>
    %24 = arith.select %22, %19, %23 : vector<8x16xi1>, vector<8x16xf32>
    %25 = math.exp %24 : vector<8x16xf32>
    %26 = arith.select %22, %25, %19 : vector<8x16xi1>, vector<8x16xf32>
    %c0_18 = arith.constant 0 : index
    %c0_19 = arith.constant 0 : index
    %27 = vector.load %arg8[%c0_18, %c0_19] : memref<8x16xf32, #tpu.memory_space<vmem>>, vector<8x16xf32>
    tpu.vector_store %arg8[%c0_18, %c0_19], %26 {strides = array<i32>} : memref<8x16xf32, #tpu.memory_space<vmem>>, vector<8x16xf32>,
    return
  }
  func.func @transform_0(%arg0: i32) -> (i32, i32) {
    %c0_i32 = arith.constant 0 : i32
    %c0_i32_0 = arith.constant 0 : i32
    return %arg0, %c0_i32 : i32, i32
  }
  func.func @transform_1(%arg0: i32) -> (i32, i32) {
    %c0_i32 = arith.constant 0 : i32
    %c0_i32_0 = arith.constant 0 : i32
    %c0_i32_1 = arith.constant 0 : i32
    return %c0_i32, %c0_i32_0 : i32, i32
  }
  func.func @transform_2(%arg0: i32) -> (i32, i32) {
    %c0_i32 = arith.constant 0 : i32
    %c0_i32_0 = arith.constant 0 : i32
    %c0_i32_1 = arith.constant 0 : i32
    return %c0_i32, %c0_i32_0 : i32, i32
  }
  func.func @transform_3(%arg0: i32) -> (i32, i32) {
    %c0_i32 = arith.constant 0 : i32
    %c0_i32_0 = arith.constant 0 : i32
    %c0_i32_1 = arith.constant 0 : i32
    return %c0_i32, %c0_i32_0 : i32, i32
  }
  func.func @transform_4(%arg0: i32) -> (i32, i32) {
    %c0_i32 = arith.constant 0 : i32
    %c0_i32_0 = arith.constant 0 : i32
    %c0_i32_1 = arith.constant 0 : i32
    return %c0_i32, %c0_i32_0 : i32, i32
  }
  func.func @transform_5(%arg0: i32) -> (i32, i32) {
    %c0_i32 = arith.constant 0 : i32
    %c0_i32_0 = arith.constant 0 : i32
    %c0_i32_1 = arith.constant 0 : i32
    return %c0_i32, %c0_i32_0 : i32, i32
  }
  func.func @transform_6(%arg0: i32) -> (i32, i32) {
    %c0_i32 = arith.constant 0 : i32
    %c0_i32_0 = arith.constant 0 : i32
    %c0_i32_1 = arith.constant 0 : i32
    return %c0_i32, %c0_i32_0 : i32, i32
  }
  func.func @transform_7(%arg0: i32) -> (i32, i32) {
    %c0_i32 = arith.constant 0 : i32
    %c0_i32_0 = arith.constant 0 : i32
    return %arg0, %c0_i32 : i32, i32
  }
}

</mosaic_0001>

<llo_original>
// kernel: tpu_custom_call.1
$region0: #{tpu_custom_call.1}
  #allocation0 [shape = 'u32[]', space=smem, size = 0x4, offset = 0x4, fixed_abs, tag = 'smem constant byte address 0x4 - core index']
  #allocation1 [shape = 'u32[72,128]{1,0:T(1,128)}', space=vmem, size = 0x9000, scoped, tag = 'internal scratch']
  %s0 = inlined_call_operand.hbm [shape: f32[8,16], index: 0, kind: input, shape index: {}]
  %s1 = inlined_call_operand.vmem [shape: f32[16,32], index: 1, kind: input, shape index: {}]
  %s2 = inlined_call_operand.vmem [shape: f32[1,32], index: 2, kind: input, shape index: {}]
  %s3 = inlined_call_operand.vmem [shape: f32[32,32], index: 3, kind: input, shape index: {}]
  %s4 = inlined_call_operand.vmem [shape: f32[1,32], index: 4, kind: input, shape index: {}]
  %s5 = inlined_call_operand.vmem [shape: f32[32,16], index: 5, kind: input, shape index: {}]
  %s6 = inlined_call_operand.vmem [shape: f32[1,16], index: 6, kind: input, shape index: {}]
  %s7 = inlined_call_operand.hbm [shape: f32[8,16], index: 7, kind: output, shape index: {}]
  %s8 = sld [smem:[#allocation0]]
  $region42: #{tpu_custom_call.1} parent=0
    _
  %s10 = ssub.s32 1, %s8
  %s11 = scalar_select 0, %s10, %s8
  $region1: #{tpu_custom_call.1} parent=0
    #allocation2 [shape = 'u8[4096]{0}', space=vmem, size = 0x1000, scoped, tag = 'input window, operand 0, single buffered']
    #allocation3 [shape = 's32[1]{0}', space=sflag, size = 0x4, scoped, tag = 'scoped memory for tpu_custom_call.1']
    #allocation4 [shape = 's32[1]{0}', space=sflag, size = 0x4, scoped, tag = 'scoped memory for tpu_custom_call.1']
    #allocation5 [shape = 'u8[4096]{0}', space=vmem, size = 0x1000, scoped, tag = 'output window, operand 0, single buffered']
    %12 = vsyncpa [#allocation3], 0
    %13 = vsyncpa [#allocation4], 0
    // Predicated region
    $region2: #{tpu_custom_call.1} parent=1 // pred_check
      _
    $region3: #{tpu_custom_call.1} parent=1 // pred_check_branch
      %15 = sbr.rel (0) target = $region5
    $region4: #{tpu_custom_call.1} parent=1 // pred_region
      %17 = vsyncadd [#allocation3], 0
      %s19 = sshll.u32 %s0, 4
      %s20 = int_to_ptr.hbm [resolvable:$true] %s19
      %s21 = sshll.u32 [#allocation2], 4
      %s22 = int_to_ptr.vmem [resolvable:$true] %s21
      %24 = dma.hbm_to_vmem [thread:$0]  %s20, 128, %s22, [#allocation3]
    $region5: #{tpu_custom_call.1} parent=1 // pred_fallthru
      _
    // Predicated region
    $region6: #{tpu_custom_call.1} parent=1 // pred_check
      _
    $region7: #{tpu_custom_call.1} parent=1 // pred_check_branch
      %26 = sbr.rel (0) target = $region9
    $region8: #{tpu_custom_call.1} parent=1 // pred_region
      _
    $region9: #{tpu_custom_call.1} parent=1 // pred_fallthru
      _
    // Predicated region
    $region10: #{tpu_custom_call.1} parent=1 // pred_check
      _
    $region11: #{tpu_custom_call.1} parent=1 // pred_check_branch
      %28 = sbr.rel (0) target = $region13
    $region12: #{tpu_custom_call.1} parent=1 // pred_region
      _
    $region13: #{tpu_custom_call.1} parent=1 // pred_fallthru
      _
    // Predicated region
    $region14: #{tpu_custom_call.1} parent=1 // pred_check
      _
    $region15: #{tpu_custom_call.1} parent=1 // pred_check_branch
      %30 = sbr.rel (0) target = $region17
    $region16: #{tpu_custom_call.1} parent=1 // pred_region
      _
    $region17: #{tpu_custom_call.1} parent=1 // pred_fallthru
      _
    // Predicated region
    $region18: #{tpu_custom_call.1} parent=1 // pred_check
      _
    $region19: #{tpu_custom_call.1} parent=1 // pred_check_branch
      %32 = sbr.rel (0) target = $region21
    $region20: #{tpu_custom_call.1} parent=1 // pred_region
      _
    $region21: #{tpu_custom_call.1} parent=1 // pred_fallthru
      _
    // Predicated region
    $region22: #{tpu_custom_call.1} parent=1 // pred_check
      _
    $region23: #{tpu_custom_call.1} parent=1 // pred_check_branch
      %34 = sbr.rel (0) target = $region25
    $region24: #{tpu_custom_call.1} parent=1 // pred_region
      _
    $region25: #{tpu_custom_call.1} parent=1 // pred_fallthru
      _
    // Predicated region
    $region26: #{tpu_custom_call.1} parent=1 // pred_check
      _
    $region27: #{tpu_custom_call.1} parent=1 // pred_check_branch
      %36 = sbr.rel (0) target = $region29
    $region28: #{tpu_custom_call.1} parent=1 // pred_region
      _
    $region29: #{tpu_custom_call.1} parent=1 // pred_fallthru
      _
    // Predicated region
    $region30: #{tpu_custom_call.1} parent=1 // pred_check
      _
    $region31: #{tpu_custom_call.1} parent=1 // pred_check_branch
      %38 = sbr.rel (0) target = $region33
    $region32: #{tpu_custom_call.1} parent=1 // pred_region
      %40 = dma.done [#allocation3], 128
    $region33: #{tpu_custom_call.1} parent=1 // pred_fallthru
      _
    %v41 = vld [vmem:[#allocation2] sm:$0xff]
    %v42 = vld [vmem:[%s1] sm:$0xff]
    %v43 = vld [vmem:[%s1 + $0x8] sm:$0xff]
    %v44 = vld [vmem:[%s2] sm:$0x1]
    %v46 = vperm.slane %v44, 0
    %vm48 = vcmask 130048
    %v50 = vsel %vm48, %v41, 0
    %52 = vmatpush.msra.mxu0 0.0
    %53 = vmatpush.msra.mxu0 0.0
    %54 = vmatpush.msra.mxu0 0.0
    %55 = vmatpush.msra.mxu0 0.0
    %56 = vmatpush.msra.mxu0 0.0
    %57 = vmatpush.msra.mxu0 0.0
    %58 = vmatpush.msra.mxu0 0.0
    %59 = vmatpush.msra.mxu0 0.0
    %60 = vmatpush.msra.mxu0 0.0
    %61 = vmatpush.msra.mxu0 0.0
    %62 = vmatpush.msra.mxu0 0.0
    %63 = vmatpush.msra.mxu0 0.0
    %64 = vmatpush.msra.mxu0 0.0
    %65 = vmatpush.msra.mxu0 0.0
    %66 = vmatpush.msra.mxu0 %v43
    %67 = vmatpush.msra.mxu0 %v42
    %68 = vmatmul.f32.gmra.mxu0 %v50
    %v69 = vpop.f32.mrf.mxu0
    %v70 = vadd.f32 %v46, %v69
    %71 = vdwg.mxu0
    %v72 = vmax.f32 %v70, 0.0
    %v73 = vld [vmem:[%s3] sm:$0xff]
    %v74 = vld [vmem:[%s3 + $0x8] sm:$0xff]
    %v75 = vld [vmem:[%s3 + $0x10] sm:$0xff]
    %v76 = vld [vmem:[%s3 + $0x18] sm:$0xff]
    %v77 = vld [vmem:[%s4] sm:$0x1]
    %v79 = vperm.slane %v77, 0
    %vm81 = vcmask 261120
    %v83 = vsel %vm81, %v72, 0
    %85 = vmatpush.msra.mxu0 0.0
    %86 = vmatpush.msra.mxu0 0.0
    %87 = vmatpush.msra.mxu0 0.0
    %88 = vmatpush.msra.mxu0 0.0
    %89 = vmatpush.msra.mxu0 0.0
    %90 = vmatpush.msra.mxu0 0.0
    %91 = vmatpush.msra.mxu0 0.0
    %92 = vmatpush.msra.mxu0 0.0
    %93 = vmatpush.msra.mxu0 0.0
    %94 = vmatpush.msra.mxu0 0.0
    %95 = vmatpush.msra.mxu0 0.0
    %96 = vmatpush.msra.mxu0 0.0
    %97 = vmatpush.msra.mxu0 %v76
    %98 = vmatpush.msra.mxu0 %v75
    %99 = vmatpush.msra.mxu0 %v74
    %100 = vmatpush.msra.mxu0 %v73
    %101 = vmatmul.f32.gmra.mxu0 %v83
    %v102 = vpop.f32.mrf.mxu0
    %v103 = vadd.f32 %v79, %v102
    %104 = vdwg.mxu0
    %v105 = vmax.f32 %v103, 0.0
    %v106 = vld [vmem:[%s5] sm:$0xff]
    %v107 = vld [vmem:[%s5 + $0x8] sm:$0xff]
    %v108 = vld [vmem:[%s5 + $0x10] sm:$0xff]
    %v109 = vld [vmem:[%s5 + $0x18] sm:$0xff]
    %v110 = vld [vmem:[%s6] sm:$0x1]
    %v112 = vperm.slane %v110, 0
    %v115 = vsel %vm81, %v105, 0
    %117 = vmatpush.msra.mxu0 0.0
    %118 = vmatpush.msra.mxu0 0.0
    %119 = vmatpush.msra.mxu0 0.0
    %120 = vmatpush.msra.mxu0 0.0
    %121 = vmatpush.msra.mxu0 0.0
    %122 = vmatpush.msra.mxu0 0.0
    %123 = vmatpush.msra.mxu0 0.0
    %124 = vmatpush.msra.mxu0 0.0
    %125 = vmatpush.msra.mxu0 0.0
    %126 = vmatpush.msra.mxu0 0.0
    %127 = vmatpush.msra.mxu0 0.0
    %128 = vmatpush.msra.mxu0 0.0
    %129 = vmatpush.msra.mxu0 %v109
    %130 = vmatpush.msra.mxu0 %v108
    %131 = vmatpush.msra.mxu0 %v107
    %132 = vmatpush.msra.mxu0 %v106
    %133 = vmatmul.f32.gmra.mxu0 %v115
    %v134 = vpop.f32.mrf.mxu0
    %v135 = vadd.f32 %v112, %v134
    %136 = vdwg.mxu0
    %v137 = vlaneseq
    %v138 = vand.u32 %v137, 127
    %vm139 = vcmp.ge.s32.totalorder %v138, 8
    %v140 = vsel %vm139, %v135, 0.0
    %v141 = vmul.f32 %v140, 1.442695
    %v142 = vpow.pop %v141
    %v143 = vsel %vm139, %v142, %v135
    %144 = vst.msk [vmem:[#allocation5] sm:$0xff] %vm48, %v143
    // Predicated region
    $region34: #{tpu_custom_call.1} parent=1 // pred_check
      _
    $region35: #{tpu_custom_call.1} parent=1 // pred_check_branch
      %146 = sbr.rel (0) target = $region37
    $region36: #{tpu_custom_call.1} parent=1 // pred_region
      %148 = vsyncadd [#allocation4], 0
      %s150 = sshll.u32 [#allocation5], 4
      %s151 = int_to_ptr.vmem [resolvable:$true] %s150
      %s152 = sshll.u32 %s7, 4
      %s153 = int_to_ptr.hbm [resolvable:$true] %s152
      %155 = dma.vmem_to_hbm [thread:$0]  %s151, 128, %s153, [#allocation4]
    $region37: #{tpu_custom_call.1} parent=1 // pred_fallthru
      _
    // Predicated region
    $region38: #{tpu_custom_call.1} parent=1 // pred_check
      _
    $region39: #{tpu_custom_call.1} parent=1 // pred_check_branch
      %157 = sbr.rel (0) target = $region41
    $region40: #{tpu_custom_call.1} parent=1 // pred_region
      %159 = dma.done [#allocation4], 128
    $region41: #{tpu_custom_call.1} parent=1 // pred_fallthru
      _
    %160 = vsyncpa [#allocation3], 1
    %161 = vsyncpa [#allocation4], 1

</llo_original>
